<compile_context>
chip_gen: v7x
topology: tpu7x:2x2x1
jax: 0.10.0
libtpu: 0.0.40
codegen_flags: <defaults>
</compile_context>

<pallas_src>
import numpy as np

import jax
import jax.numpy as jnp
from jax.experimental import pallas as pl
from jax.experimental.pallas import tpu as pltpu


def _patch_embed_kernel(p_ref, w_ref, cls_ref, pos_ref, o_ref):
    # p_ref:   (G, N, K)    bf16  patches for G images
    # w_ref:   (K, E)       bf16  flattened conv weight (pre-transposed), resident
    # cls_ref: (1, E)       f32   cls_token + positions[0]
    # pos_ref: (N, E)       f32   positions[1:] + conv bias
    # o_ref:   (G, N+1, E)        output tokens for G images
    w = w_ref[...]
    cls_row = cls_ref[...].astype(o_ref.dtype)           # (1, E), hoisted
    pos = pos_ref[...]                                    # (N, E), hoisted
    n = pos_ref.shape[0]
    g_imgs = p_ref.shape[0]
    for g in range(g_imgs):                               # static unroll, G small
        acc = jnp.dot(p_ref[g], w,
                      preferred_element_type=jnp.float32)  # (N, E) f32 on MXU
        o_ref[g, 0:1, :] = cls_row                          # cls token row
        o_ref[g, pl.ds(1, n), :] = (acc + pos).astype(o_ref.dtype)


def _pick_group_size(B, N, K, E, out_bytes, vmem_budget_bytes):
    """Images per grid step: amortize per-step overhead, keep grid >= 2, fit VMEM."""
    resident = 2 * (K * E * 2 + N * E * 4 + E * 4)        # weight + pos tables
    best = 1
    for g in range(1, min(B, 8) + 1):
        if B % g != 0:
            continue
        if B >= 2 and B // g < 2:                          # keep both TCs fed
            continue
        per_step = 2 * g * (N * K * 2 + (N + 1) * E * out_bytes)  # double-buffered
        if resident + per_step <= vmem_budget_bytes:
            best = g
    return best


def patch_embedding_forward(x, conv_w, conv_b, cls_token, positions, patch_size,
                            out_dtype=jnp.float32):
    """x: (B, C, H, W) float32.  Returns (B, N+1, E) matching the PyTorch module."""
    B, C, H, W = x.shape
    E = conv_w.shape[0]
    P = patch_size
    Hp, Wp = H // P, W // P
    N = Hp * Wp
    K = C * P * P

    # ---- glue: cast to bf16 FIRST (halves the bytes of the materialized
    # transpose intermediate), then extract non-overlapping patches flattened
    # in (c, ph, pw) order to match conv_w.reshape(E, K).
    xb = x.astype(jnp.bfloat16)
    patches = xb.reshape(B, C, Hp, P, Wp, P)
    patches = patches.transpose(0, 2, 4, 1, 3, 5)          # (B, Hp, Wp, C, P, P)
    patches = patches.reshape(B, N, K)                     # (B, N, K) bf16

    w_flat = conv_w.reshape(E, K).T.astype(jnp.bfloat16)   # (K, E)

    # cls row = cls_token + positions[0]; patch rows get the conv bias folded in.
    pos_cls = (positions[0:1] + cls_token.reshape(1, E)).astype(jnp.float32)   # (1, E)
    pos_patch = (positions[1:] + conv_b.reshape(1, E)).astype(jnp.float32)     # (N, E)

    out_bytes = np.dtype(out_dtype).itemsize
    G = _pick_group_size(B, N, K, E, out_bytes,
                         vmem_budget_bytes=24 * 1024 * 1024)

    out = pl.pallas_call(
        _patch_embed_kernel,
        out_shape=jax.ShapeDtypeStruct((B, N + 1, E), out_dtype),
        grid_spec=pltpu.PrefetchScalarGridSpec(
            num_scalar_prefetch=0,
            grid=(B // G,),
            in_specs=[
                pl.BlockSpec((G, N, K), lambda b: (b, 0, 0)),   # patches
                pl.BlockSpec((K, E), lambda b: (0, 0)),         # weight (resident)
                pl.BlockSpec((1, E), lambda b: (0, 0)),         # cls row (resident)
                pl.BlockSpec((N, E), lambda b: (0, 0)),         # pos rows (resident)
            ],
            out_specs=pl.BlockSpec((G, N + 1, E), lambda b: (b, 0, 0)),
        ),
        compiler_params=pltpu.CompilerParams(
            dimension_semantics=("parallel",),
            allow_input_fusion=[True, False, False, False],
            vmem_limit_bytes=32 * 1024 * 1024,
        ),
    )(patches, w_flat, pos_cls, pos_patch)
    return out


def _reference_forward(x, conv_w, conv_b, cls_token, positions, patch_size):
    """Pure-JAX f32 reference mirroring the PyTorch forward (sanity check)."""
    B = x.shape[0]
    E = conv_w.shape[0]
    y = jax.lax.conv_general_dilated(
        x, conv_w, window_strides=(patch_size, patch_size), padding="VALID",
        dimension_numbers=("NCHW", "OIHW", "NCHW"))
    y = y + conv_b.reshape(1, E, 1, 1)
    Bh, Eh, Hh, Wh = y.shape
    y = y.reshape(Bh, Eh, Hh * Wh).transpose(0, 2, 1)       # b e h w -> b (h w) e
    cls = jnp.broadcast_to(cls_token, (B, 1, E))
    y = jnp.concatenate([cls, y], axis=1)
    return y + positions[None, :, :]


if __name__ == "__main__":
    # Small shapes consistent with the module: B=2, C=4, img=16, patch=4, emb=32.
    B, C, IMG, P, E = 2, 4, 16, 4, 32
    N = (IMG // P) ** 2

    key = jax.random.PRNGKey(0)
    kx, kw, kb, kc, kp = jax.random.split(key, 5)
    x = jax.random.normal(kx, (B, C, IMG, IMG), dtype=jnp.float32)
    conv_w = jax.random.normal(kw, (E, C, P, P), dtype=jnp.float32) * 0.02
    conv_b = jax.random.normal(kb, (E,), dtype=jnp.float32) * 0.02
    cls_token = jax.random.normal(kc, (1, 1, E), dtype=jnp.float32)
    positions = jax.random.normal(kp, (N + 1, E), dtype=jnp.float32)

    out = patch_embedding_forward(x, conv_w, conv_b, cls_token, positions, P)
    out = jax.block_until_ready(out)

    ref = _reference_forward(x, conv_w, conv_b, cls_token, positions, P)
    assert out.shape == (B, N + 1, E), out.shape
    # bf16 MXU inputs -> compare against the f32 conv reference with a loosened
    # (but still tight for these magnitudes) tolerance.  The cls row is exact.
    assert jnp.allclose(out, ref, atol=2e-2, rtol=2e-2), "mismatch vs reference"

    print("KERNEL_OK")
</pallas_src>

<mosaic_0001>
module attributes {stable_mosaic.version = 11 : i64} {
  func.func @_patch_embed_kernel(%arg0: i32, %arg1: memref<1x16x64xbf16, #tpu.memory_space<vmem>>, %arg2: memref<64x32xbf16, #tpu.memory_space<vmem>>, %arg3: memref<1x32xf32, #tpu.memory_space<vmem>>, %arg4: memref<16x32xf32, #tpu.memory_space<vmem>>, %arg5: memref<1x17x32xf32, #tpu.memory_space<vmem>>) attributes {dimension_semantics = [#tpu.dimension_semantics<parallel>], iteration_bounds = array<i64: 2>, scalar_prefetch = 0 : i64, scratch_operands = 0 : i64, tpu.core_type = #tpu.core_type<tc>, window_params = [{transform_indices = @transform_0, window_bounds = array<i64: 1, 16, 64>}, {pipeline_mode = #tpu.pipeline_mode<synchronous>, transform_indices = @transform_1, window_bounds = array<i64: 64, 32>}, {pipeline_mode = #tpu.pipeline_mode<synchronous>, transform_indices = @transform_2, window_bounds = array<i64: 1, 32>}, {pipeline_mode = #tpu.pipeline_mode<synchronous>, transform_indices = @transform_3, window_bounds = array<i64: 16, 32>}, {transform_indices = @transform_4, window_bounds = array<i64: 1, 17, 32>}]} {
    %c0 = arith.constant 0 : index
    %c0_0 = arith.constant 0 : index
    %0 = vector.load %arg2[%c0, %c0_0] : memref<64x32xbf16, #tpu.memory_space<vmem>>, vector<64x32xbf16>
    %c0_1 = arith.constant 0 : index
    %c0_2 = arith.constant 0 : index
    %1 = vector.load %arg3[%c0_1, %c0_2] : memref<1x32xf32, #tpu.memory_space<vmem>>, vector<1x32xf32>
    %c0_3 = arith.constant 0 : index
    %c0_4 = arith.constant 0 : index
    %2 = vector.load %arg4[%c0_3, %c0_4] : memref<16x32xf32, #tpu.memory_space<vmem>>, vector<16x32xf32>
    %c0_5 = arith.constant 0 : index
    %c0_6 = arith.constant 0 : index
    %c0_7 = arith.constant 0 : index
    %3 = vector.load %arg1[%c0_5, %c0_6, %c0_7] : memref<1x16x64xbf16, #tpu.memory_space<vmem>>, vector<1x16x64xbf16>
    %4 = vector.shape_cast %3 : vector<1x16x64xbf16> to vector<16x64xbf16>
    %cst = arith.constant dense<0.000000e+00> : vector<16x32xf32>
    %5 = tpu.matmul %4, %0, %cst {dimension_numbers = #tpu.dot_dimension_numbers<[1], [0], [0], [1], [0, 0, 1, 1], [], []>} : vector<16x64xbf16>, vector<64x32xbf16>, vector<16x32xf32> -> vector<16x32xf32>
    %c0_8 = arith.constant 0 : index
    %c0_9 = arith.constant 0 : index
    %c0_10 = arith.constant 0 : index
    %6 = vector.load %arg5[%c0_8, %c0_9, %c0_10] : memref<1x17x32xf32, #tpu.memory_space<vmem>>, vector<1x1x32xf32>
    %7 = vector.shape_cast %6 : vector<1x1x32xf32> to vector<1x32xf32>
    %8 = vector.shape_cast %1 : vector<1x32xf32> to vector<1x1x32xf32>
    tpu.vector_store %arg5[%c0_8, %c0_9, %c0_10], %8 {strides = array<i32>} : memref<1x17x32xf32, #tpu.memory_space<vmem>>, vector<1x1x32xf32>,
    %9 = arith.addf %5, %2 : vector<16x32xf32>
    %c0_11 = arith.constant 0 : index
    %c1 = arith.constant 1 : index
    %c0_12 = arith.constant 0 : index
    %10 = vector.load %arg5[%c0_11, %c1, %c0_12] : memref<1x17x32xf32, #tpu.memory_space<vmem>>, vector<1x16x32xf32>
    %11 = vector.shape_cast %10 : vector<1x16x32xf32> to vector<16x32xf32>
    %12 = vector.shape_cast %9 : vector<16x32xf32> to vector<1x16x32xf32>
    tpu.vector_store %arg5[%c0_11, %c1, %c0_12], %12 {strides = array<i32>} : memref<1x17x32xf32, #tpu.memory_space<vmem>>, vector<1x16x32xf32>,
    return
  }
  func.func @transform_0(%arg0: i32) -> (i32, i32, i32) {
    %c0_i32 = arith.constant 0 : i32
    %c0_i32_0 = arith.constant 0 : i32
    %c0_i32_1 = arith.constant 0 : i32
    return %arg0, %c0_i32, %c0_i32_0 : i32, i32, i32
  }
  func.func @transform_1(%arg0: i32) -> (i32, i32) {
    %c0_i32 = arith.constant 0 : i32
    %c0_i32_0 = arith.constant 0 : i32
    %c0_i32_1 = arith.constant 0 : i32
    return %c0_i32, %c0_i32_0 : i32, i32
  }
  func.func @transform_2(%arg0: i32) -> (i32, i32) {
    %c0_i32 = arith.constant 0 : i32
    %c0_i32_0 = arith.constant 0 : i32
    %c0_i32_1 = arith.constant 0 : i32
    return %c0_i32, %c0_i32_0 : i32, i32
  }
  func.func @transform_3(%arg0: i32) -> (i32, i32) {
    %c0_i32 = arith.constant 0 : i32
    %c0_i32_0 = arith.constant 0 : i32
    %c0_i32_1 = arith.constant 0 : i32
    return %c0_i32, %c0_i32_0 : i32, i32
  }
  func.func @transform_4(%arg0: i32) -> (i32, i32, i32) {
    %c0_i32 = arith.constant 0 : i32
    %c0_i32_0 = arith.constant 0 : i32
    %c0_i32_1 = arith.constant 0 : i32
    return %arg0, %c0_i32, %c0_i32_0 : i32, i32, i32
  }
}

</mosaic_0001>

<llo_original>
// kernel: tpu_custom_call.1
$region0: #{tpu_custom_call.1}
  #allocation0 [shape = 'u32[]', space=smem, size = 0x4, offset = 0x4, fixed_abs, tag = 'smem constant byte address 0x4 - core index']
  #allocation1 [shape = 'u32[144,128]{1,0:T(1,128)}', space=vmem, size = 0x12000, scoped, tag = 'internal scratch']
  %s0 = inlined_call_operand.vmem [shape: bf16[2,16,64], index: 0, kind: input, shape index: {}]
  %s1 = inlined_call_operand.vmem [shape: bf16[64,32], index: 1, kind: input, shape index: {}]
  %s2 = inlined_call_operand.vmem [shape: f32[1,32], index: 2, kind: input, shape index: {}]
  %s3 = inlined_call_operand.vmem [shape: f32[16,32], index: 3, kind: input, shape index: {}]
  %s4 = inlined_call_operand.vmem [shape: f32[2,17,32], index: 4, kind: output, shape index: {}]
  %s5 = sld [smem:[#allocation0]]
  $region49: #{tpu_custom_call.1} parent=0
    _
  %s7 = ssub.s32 1, %s5
  %s8 = scalar_select 0, %s7, %s5
  loop: start=0, step=1, limit=4
  $region2: #{tpu_custom_call.1} parent=0 // loop_pre_header
    _
  $region3: #{tpu_custom_call.1} parent=0 // loop_header
    %s10 = sphi 0, %s14
    %p11 = scmp.ge.s32.totalorder %s10, 4
    %s20 = sphi 0, %s22
    %s23 = sphi 0, %s20
    %s24 = sphi 0, %s23
    %s40 = sphi 0, %s24
    %s44 = sphi 0, %s44
    %s46 = sphi 0, %s44
    %s47 = sphi 0, %s46
    %s61 = sphi 0, %s47
    %s65 = sphi 0, %s65
    %s67 = sphi 0, %s65
    %s68 = sphi 0, %s67
    %s82 = sphi 0, %s68
    %s86 = sphi 0, %s86
    %s88 = sphi 0, %s86
    %s89 = sphi 0, %s88
    %s103 = sphi 0, %s89
    %s109 = sphi 0, %s111
    %s112 = sphi 0, %s109
    %s113 = sphi 0, %s112
    %s129 = sphi 0, %s113
  $region4: #{tpu_custom_call.1} parent=0 // loop_header_branch
    %13 = sbr.rel (%p11) target = $region8
  $region5: #{tpu_custom_call.1} parent=0 // loop_body
    %s15 = ssub.s32 %s10, 1
    %s16 = ssub.s32 %s10, 2
    %s17 = sadd.s32 %s10, 1
    %s18 = ssub.s32 %s10, %s17
    %p19 = scmp.eq.s32.totalorder %s18, 0
    %s21 = sadd.s32 %s20, 1
    %s22 = scalar_select %p19, %s20, %s21
    %p25 = pneg %p19
    %p26 = scmp.eq.s32.totalorder %s10, 1
    %p27 = por %p25, %p26
    %p28 = scmp.ne.s32.totalorder %s20, %s23
    %p29 = scmp.eq.s32.totalorder %s10, 0
    %p30 = por %p28, %p29
    %p31 = scmp.ne.s32.totalorder %s20, %s23
    %p32 = scmp.eq.s32.totalorder %s15, 1
    %p33 = por %p31, %p32
    %p34 = scmp.ne.s32.totalorder %s23, %s24
    %p35 = scmp.eq.s32.totalorder %s15, 0
    %p36 = por %p34, %p35
    %p37 = scmp.ne.s32.totalorder %s23, %s24
    %p38 = scmp.eq.s32.totalorder %s16, 1
    %p39 = por %p37, %p38
    %p41 = scmp.ne.s32.totalorder %s24, %s40
    %p42 = scmp.eq.s32.totalorder %s16, 0
    %p43 = por %p41, %p42
    %s45 = sadd.s32 %s44, 1
    %p48 = scmp.eq.s32.totalorder %s10, 1
    %p49 = scmp.ne.s32.totalorder %s44, %s46
    %p50 = scmp.eq.s32.totalorder %s10, 0
    %p51 = por %p49, %p50
    %p52 = scmp.ne.s32.totalorder %s44, %s46
    %p53 = scmp.eq.s32.totalorder %s15, 1
    %p54 = por %p52, %p53
    %p55 = scmp.ne.s32.totalorder %s46, %s47
    %p56 = scmp.eq.s32.totalorder %s15, 0
    %p57 = por %p55, %p56
    %p58 = scmp.ne.s32.totalorder %s46, %s47
    %p59 = scmp.eq.s32.totalorder %s16, 1
    %p60 = por %p58, %p59
    %p62 = scmp.ne.s32.totalorder %s47, %s61
    %p63 = scmp.eq.s32.totalorder %s16, 0
    %p64 = por %p62, %p63
    %s66 = sadd.s32 %s65, 1
    %p69 = scmp.eq.s32.totalorder %s10, 1
    %p70 = scmp.ne.s32.totalorder %s65, %s67
    %p71 = scmp.eq.s32.totalorder %s10, 0
    %p72 = por %p70, %p71
    %p73 = scmp.ne.s32.totalorder %s65, %s67
    %p74 = scmp.eq.s32.totalorder %s15, 1
    %p75 = por %p73, %p74
    %p76 = scmp.ne.s32.totalorder %s67, %s68
    %p77 = scmp.eq.s32.totalorder %s15, 0
    %p78 = por %p76, %p77
    %p79 = scmp.ne.s32.totalorder %s67, %s68
    %p80 = scmp.eq.s32.totalorder %s16, 1
    %p81 = por %p79, %p80
    %p83 = scmp.ne.s32.totalorder %s68, %s82
    %p84 = scmp.eq.s32.totalorder %s16, 0
    %p85 = por %p83, %p84
    %s87 = sadd.s32 %s86, 1
    %p90 = scmp.eq.s32.totalorder %s10, 1
    %p91 = scmp.ne.s32.totalorder %s86, %s88
    %p92 = scmp.eq.s32.totalorder %s10, 0
    %p93 = por %p91, %p92
    %p94 = scmp.ne.s32.totalorder %s86, %s88
    %p95 = scmp.eq.s32.totalorder %s15, 1
    %p96 = por %p94, %p95
    %p97 = scmp.ne.s32.totalorder %s88, %s89
    %p98 = scmp.eq.s32.totalorder %s15, 0
    %p99 = por %p97, %p98
    %p100 = scmp.ne.s32.totalorder %s88, %s89
    %p101 = scmp.eq.s32.totalorder %s16, 1
    %p102 = por %p100, %p101
    %p104 = scmp.ne.s32.totalorder %s89, %s103
    %p105 = scmp.eq.s32.totalorder %s16, 0
    %p106 = por %p104, %p105
    %s107 = ssub.s32 %s10, %s17
    %p108 = scmp.eq.s32.totalorder %s107, 0
    %s110 = sadd.s32 %s109, 1
    %s111 = scalar_select %p108, %s109, %s110
    %p114 = pneg %p108
    %p115 = scmp.eq.s32.totalorder %s10, 1
    %p116 = por %p114, %p115
    %p117 = scmp.ne.s32.totalorder %s109, %s112
    %p118 = scmp.eq.s32.totalorder %s10, 0
    %p119 = por %p117, %p118
    %p120 = scmp.ne.s32.totalorder %s109, %s112
    %p121 = scmp.eq.s32.totalorder %s15, 1
    %p122 = por %p120, %p121
    %p123 = scmp.ne.s32.totalorder %s112, %s113
    %p124 = scmp.eq.s32.totalorder %s15, 0
    %p125 = por %p123, %p124
    %p126 = scmp.ne.s32.totalorder %s112, %s113
    %p127 = scmp.eq.s32.totalorder %s16, 1
    %p128 = por %p126, %p127
    %p130 = scmp.ne.s32.totalorder %s113, %s129
    %p131 = scmp.eq.s32.totalorder %s16, 0
    %p132 = por %p130, %p131
    %p133 = scmp.le.s32.totalorder 1, %s10
    %p134 = scmp.lt.s32.totalorder %s10, 3
    %p135 = pnand %p133, %p134
    %p136 = pneg %p135
    // Predicated region
    $region9: #{tpu_custom_call.1} parent=5 // pred_check
      _
    $region10: #{tpu_custom_call.1} parent=5 // pred_check_branch
      %138 = sbr.rel (%p135) target = $region12
    $region11: #{tpu_custom_call.1} parent=5 // pred_region
      %s139 = ssub.s32 %s10, 1
      // Predicated region
      $region13: #{tpu_custom_call.1} parent=11 // pred_check
        %p140 = pneg %p57
      $region14: #{tpu_custom_call.1} parent=11 // pred_check_branch
        %142 = sbr.rel (%p140) target = $region16
      $region15: #{tpu_custom_call.1} parent=11 // pred_region
        _
      $region16: #{tpu_custom_call.1} parent=11 // pred_fallthru
        _
      // Predicated region
      $region17: #{tpu_custom_call.1} parent=11 // pred_check
        %p143 = pneg %p78
      $region18: #{tpu_custom_call.1} parent=11 // pred_check_branch
        %145 = sbr.rel (%p143) target = $region20
      $region19: #{tpu_custom_call.1} parent=11 // pred_region
        _
      $region20: #{tpu_custom_call.1} parent=11 // pred_fallthru
        _
      // Predicated region
      $region21: #{tpu_custom_call.1} parent=11 // pred_check
        %p146 = pneg %p99
      $region22: #{tpu_custom_call.1} parent=11 // pred_check_branch
        %148 = sbr.rel (%p146) target = $region24
      $region23: #{tpu_custom_call.1} parent=11 // pred_region
        _
      $region24: #{tpu_custom_call.1} parent=11 // pred_fallthru
        _
    $region12: #{tpu_custom_call.1} parent=5 // pred_fallthru
      _
    %p149 = scmp.lt.s32.totalorder %s10, 2
    // Predicated region
    $region25: #{tpu_custom_call.1} parent=5 // pred_check
      %p150 = pneg %p149
    $region26: #{tpu_custom_call.1} parent=5 // pred_check_branch
      %152 = sbr.rel (%p150) target = $region28
    $region27: #{tpu_custom_call.1} parent=5 // pred_region
      // Predicated region
      $region29: #{tpu_custom_call.1} parent=27 // pred_check
        %p153 = pneg %p30
      $region30: #{tpu_custom_call.1} parent=27 // pred_check_branch
        %155 = sbr.rel (%p153) target = $region32
      $region31: #{tpu_custom_call.1} parent=27 // pred_region
        %p156 = scmp.lt.s32.totalorder %s10, 1
        %s157 = scalar_select %p156, %s10, 1
        %s158 = smul.addr %s157, 2
        %s159 = smul.addr %s158, 4
        %s160 = scalar_lea.vmem %s0, %s159
      $region32: #{tpu_custom_call.1} parent=27 // pred_fallthru
        _
    $region28: #{tpu_custom_call.1} parent=5 // pred_fallthru
      _
    %p161 = scmp.le.s32.totalorder 1, %s10
    %p162 = scmp.lt.s32.totalorder %s10, 3
    %p163 = pnand %p161, %p162
    %p164 = pneg %p163
    // Predicated region
    $region33: #{tpu_custom_call.1} parent=5 // pred_check
      _
    $region34: #{tpu_custom_call.1} parent=5 // pred_check_branch
      %166 = sbr.rel (%p163) target = $region36
    $region35: #{tpu_custom_call.1} parent=5 // pred_region
      %s167 = ssub.s32 %s10, 1
      %p168 = scmp.lt.s32.totalorder %s15, 1
      %s169 = scalar_select %p168, %s15, 1
      %s170 = smul.addr %s169, 2
      %s171 = smul.addr %s170, 4
      %s172 = scalar_lea.vmem %s0, %s171
      %p173 = pneg %p36
      %p174 = pneg %p33
      %p175 = pneg %p57
      %p176 = pneg %p54
      %p177 = pneg %p78
      %p178 = pneg %p75
      %p179 = pneg %p99
      %p180 = pneg %p96
      %p181 = pneg %p125
      %p182 = pneg %p122
      %p183 = scmp.lt.s32.totalorder %s15, 1
      %s184 = scalar_select %p183, %s15, 1
      %s185 = smul.addr %s184, 3
      %s186 = smul.addr %s185, 8
      %s187 = scalar_lea.vmem %s4, %s186
      %p188 = scmp.lt.s32.totalorder %s15, 1
      %s189 = scalar_select %p188, %s15, 1
      %s190 = smul.addr %s189, 2
      %s191 = smul.addr %s190, 4
      %s192 = scalar_lea.vmem %s0, %s191
      %p193 = scmp.lt.s32.totalorder %s15, 1
      %s194 = scalar_select %p193, %s15, 1
      %s195 = smul.addr %s194, 3
      %s196 = smul.addr %s195, 8
      %s197 = scalar_lea.vmem %s4, %s196
      %v199 = vld [vmem:[%s1] sm:$0xf]
      %v200 = vld [vmem:[%s1 + $0x4] sm:$0xf]
      %v201 = vld [vmem:[%s1 + $0x8] sm:$0xf]
      %v202 = vld [vmem:[%s1 + $0xc] sm:$0xf]
      %v203 = vld [vmem:[%s1 + $0x10] sm:$0xf]
      %v204 = vld [vmem:[%s1 + $0x14] sm:$0xf]
      %v205 = vld [vmem:[%s1 + $0x18] sm:$0xf]
      %v206 = vld [vmem:[%s1 + $0x1c] sm:$0xf]
      %v207 = vld [vmem:[%s2] sm:$0x1]
      %v208 = vld [vmem:[%s3] sm:$0xff]
      %v209 = vld [vmem:[%s3 + $0x8] sm:$0xff]
      %v210 = vld [vmem:[%s192] sm:$0xf]
      %v211 = vld [vmem:[%s192 + $0x4] sm:$0xf]
      %vm212 = vcmask 253952
      %213 = vst.msk [vmem:[%s197] sm:$0x1] %vm212, %v207
      %v216 = vunpack.c.l.b16 %v210
      %v217 = vunpack.c.l.b16 %v211
      %v218 = vpack.c.b16 %v217, %v216
      %v227 = vunpack.c.l.b16 %v199
      %v228 = vunpack.c.l.b16 %v200
      %v229 = vunpack.c.l.b16 %v201
      %v230 = vunpack.c.l.b16 %v202
      %v231 = vunpack.c.l.b16 %v203
      %v232 = vunpack.c.l.b16 %v204
      %v233 = vunpack.c.l.b16 %v205
      %v234 = vunpack.c.l.b16 %v206
      %v235 = vpack.c.b16 %v228, %v227
      %v236 = vpack.c.b16 %v230, %v229
      %v237 = vpack.c.b16 %v232, %v231
      %v238 = vpack.c.b16 %v234, %v233
      %vm243 = vcmask 523264
      %v245 = vsel %vm243, %v218, 0
      %247 = vmatprep.subr.bf16.mxu0 0
      %248 = vmatpush1.bf16.msra.mxu0 %v235
      %249 = vmatprep.subr.bf16.mxu0 0
      %250 = vmatpush1.bf16.msra.mxu0 %v236
      %251 = vmatprep.subr.bf16.mxu0 0
      %252 = vmatpush1.bf16.msra.mxu0 %v237
      %253 = vmatprep.subr.bf16.mxu0 0
      %254 = vmatpush1.bf16.msra.mxu0 %v238
      %255 = vmatprep.subr.bf16.mxu0 0
      %256 = vmatpush1.bf16.msra.mxu0 0
      %257 = vmatprep.subr.bf16.mxu0 0
      %258 = vmatpush1.bf16.msra.mxu0 0
      %259 = vmatprep.subr.bf16.mxu0 0
      %260 = vmatpush1.bf16.msra.mxu0 0
      %261 = vmatprep.subr.bf16.mxu0 0
      %262 = vmatpush1.bf16.msra.mxu0 0
      %263 = vmatprep.subr.bf16.mxu0 0
      %264 = vmatpush1.bf16.msra.mxu0 0
      %265 = vmatprep.subr.bf16.mxu0 0
      %266 = vmatpush1.bf16.msra.mxu0 0
      %267 = vmatprep.subr.bf16.mxu0 0
      %268 = vmatpush1.bf16.msra.mxu0 0
      %269 = vmatprep.subr.bf16.mxu0 0
      %270 = vmatpush1.bf16.msra.mxu0 0
      %271 = vmatprep.subr.bf16.mxu0 0
      %272 = vmatpush1.bf16.msra.mxu0 0
      %273 = vmatprep.subr.bf16.mxu0 0
      %274 = vmatpush1.bf16.msra.mxu0 0
      %275 = vmatprep.subr.bf16.mxu0 0
      %276 = vmatpush1.bf16.msra.mxu0 0
      %277 = vmatprep.subr.bf16.mxu0 0
      %278 = vmatpush1.bf16.msra.mxu0 0
      %279 = vmatprep.mubr.bf16.mxu0 0
      %280 = vmatmul.mubr.bf16.gmra.mrb[0].mxu0 %v245
      %v281 = vpop.f32.mrb[0].mxu0
      %v282 = vadd.f32 %v208, %v281
      %v283 = vpop.f32.mrb[0].mxu0
      %v284 = vpop.f32.mrb[0].mxu0
      %v285 = vadd.f32 %v209, %v284
      %v286 = vpop.f32.mrb[0].mxu0
      %287 = vdwg.mxu0
      %vm288 = vcmask 261120
      %289 = vst.msk [vmem:[%s197 + $0x1] sm:$0xff] %vm288, %v282
      %290 = vst.msk [vmem:[%s197 + $0x9] sm:$0xff] %vm288, %v285
      %p291 = scmp.lt.s32.totalorder %s15, 1
      %s292 = scalar_select %p291, %s15, 1
      %s293 = smul.addr %s292, 3
      %s294 = smul.addr %s293, 8
      %s295 = scalar_lea.vmem %s4, %s294
      // Predicated region
      $region37: #{tpu_custom_call.1} parent=35 // pred_check
        %p296 = pneg %p122
      $region38: #{tpu_custom_call.1} parent=35 // pred_check_branch
        %298 = sbr.rel (%p296) target = $region40
      $region39: #{tpu_custom_call.1} parent=35 // pred_region
        _
      $region40: #{tpu_custom_call.1} parent=35 // pred_fallthru
        _
    $region36: #{tpu_custom_call.1} parent=5 // pred_fallthru
      _
    %p299 = scmp.le.s32.totalorder 2, %s10
    // Predicated region
    $region41: #{tpu_custom_call.1} parent=5 // pred_check
      %p300 = pneg %p299
    $region42: #{tpu_custom_call.1} parent=5 // pred_check_branch
      %302 = sbr.rel (%p300) target = $region44
    $region43: #{tpu_custom_call.1} parent=5 // pred_region
      %s303 = ssub.s32 %s10, 2
      // Predicated region
      $region45: #{tpu_custom_call.1} parent=43 // pred_check
        %p304 = pneg %p128
      $region46: #{tpu_custom_call.1} parent=43 // pred_check_branch
        %306 = sbr.rel (%p304) target = $region48
      $region47: #{tpu_custom_call.1} parent=43 // pred_region
        %p307 = scmp.lt.s32.totalorder %s16, 1
        %s308 = scalar_select %p307, %s16, 1
        %s309 = smul.addr %s308, 3
        %s310 = smul.addr %s309, 8
        %s311 = scalar_lea.vmem %s4, %s310
      $region48: #{tpu_custom_call.1} parent=43 // pred_fallthru
        _
    $region44: #{tpu_custom_call.1} parent=5 // pred_fallthru
      _
  $region6: #{tpu_custom_call.1} parent=0 // loop_footer
    %s14 = sadd.s32 1, %s10
  $region7: #{tpu_custom_call.1} parent=0 // loop_footer_branch
    %9 = sbr.rel target = $region3
  $region8: #{tpu_custom_call.1} parent=0 // loop_exit
    _

</llo_original>
